<compile_context>
chip_gen: v7x
topology: tpu7x:2x2x1
jax: 0.10.0
libtpu: 0.0.40
codegen_flags: <defaults>
</compile_context>

<pallas_src>
import jax
import jax.numpy as jnp
from jax.experimental import pallas as pl
from jax.experimental.pallas import tpu as pltpu

# Layer dimension chain of the PyTorch module.
DIMS = [99, 99, 99, 99, 99, 64, 32, 16, 6]
N_LAYERS = len(DIMS) - 1          # 8 linear layers
PAD = 128                         # lane padding for every feature dim


def _round_up(x, m):
    return ((x + m - 1) // m) * m


def mlp_kernel(x_ref, w_ref, b_ref, o_ref):
    """x_ref: (TILE_B, 128) bf16 activation tile
       w_ref: (8, 128, 128) bf16 packed, zero-padded weights (resident in VMEM)
       b_ref: (8, 128)      f32  packed, zero-padded biases
       o_ref: (TILE_B, 128) f32  output tile
    The whole 8-layer affine chain runs on the MXU with f32 accumulation."""
    # Layer 0: input already bf16.
    h = jnp.dot(x_ref[...], w_ref[0], preferred_element_type=jnp.float32)
    h = h + b_ref[pl.ds(0, 1), :]                         # (1,128) f32 broadcast add
    # Layers 1..7: static unroll (LLO scheduler sees the whole chain).
    for i in range(1, N_LAYERS):
        h = jnp.dot(h.astype(jnp.bfloat16), w_ref[i],
                    preferred_element_type=jnp.float32)
        h = h + b_ref[pl.ds(i, 1), :]
    o_ref[...] = h


def prepare_params(weights, biases):
    """One-time packing/padding of parameters (do NOT call per forward).
    weights[i]: (in_i, out_i) f32 (= PyTorch weight.T); biases[i]: (out_i,) f32.
    Returns (8,128,128) bf16 weights and (8,128) f32 biases."""
    w_packed = jnp.zeros((N_LAYERS, PAD, PAD), jnp.float32)
    b_packed = jnp.zeros((N_LAYERS, PAD), jnp.float32)
    for i in range(N_LAYERS):
        d_in, d_out = DIMS[i], DIMS[i + 1]
        w_packed = w_packed.at[i, :d_in, :d_out].set(weights[i])
        b_packed = b_packed.at[i, :d_out].set(biases[i])
    return w_packed.astype(jnp.bfloat16), b_packed


def gesture_detector_forward(x, w_packed, b_packed, *, tile_b=512):
    """x: (B, 99) f32. w_packed/b_packed from prepare_params(). Returns (B, 6) f32."""
    B = x.shape[0]
    tile_b = min(tile_b, _round_up(max(B, 8), 8))   # small batches -> one small tile
    B_pad = _round_up(max(B, tile_b), tile_b)

    # Per-call work on the host graph: only pad + cast the activations (params pre-packed).
    x_p = (jnp.zeros((B_pad, PAD), jnp.bfloat16)
           .at[:B, :DIMS[0]].set(x.astype(jnp.bfloat16)))

    grid = (B_pad // tile_b,)
    flops = 2 * B_pad * N_LAYERS * PAD * PAD
    bytes_accessed = (x_p.size * 2 + w_packed.size * 2
                      + b_packed.size * 4 + B_pad * PAD * 4)

    out_p = pl.pallas_call(
        mlp_kernel,
        out_shape=jax.ShapeDtypeStruct((B_pad, PAD), jnp.float32),
        grid=grid,
        in_specs=[
            pl.BlockSpec((tile_b, PAD), lambda i: (i, 0)),             # batch tile
            pl.BlockSpec((N_LAYERS, PAD, PAD), lambda i: (0, 0, 0)),   # weights (resident)
            pl.BlockSpec((N_LAYERS, PAD), lambda i: (0, 0)),           # biases  (resident)
        ],
        out_specs=pl.BlockSpec((tile_b, PAD), lambda i: (i, 0)),
        compiler_params=pltpu.CompilerParams(
            dimension_semantics=("parallel",)),
        cost_estimate=pl.CostEstimate(
            flops=flops, transcendentals=0, bytes_accessed=bytes_accessed),
    )(x_p, w_packed, b_packed)

    return out_p[:B, :DIMS[-1]]                                        # (B, 6)


def init_params(key):
    """Deterministic init mimicking PyTorch Linear default U(-1/sqrt(fan_in), +).
    Weights stored as (in, out) == PyTorch weight.T."""
    weights, biases = [], []
    for i in range(N_LAYERS):
        d_in, d_out = DIMS[i], DIMS[i + 1]
        key, kw, kb = jax.random.split(key, 3)
        bound = 1.0 / jnp.sqrt(jnp.float32(d_in))
        weights.append(jax.random.uniform(kw, (d_in, d_out), jnp.float32,
                                          -bound, bound))
        biases.append(jax.random.uniform(kb, (d_out,), jnp.float32,
                                         -bound, bound))
    return weights, biases


def reference_forward(x, weights, biases):
    h = x
    for w, b in zip(weights, biases):
        h = h @ w + b
    return h


if __name__ == "__main__":
    key = jax.random.PRNGKey(0)
    key, kx = jax.random.split(key)

    B = 2
    x = jax.random.normal(kx, (B, DIMS[0]), jnp.float32)    # (2, 99)

    weights, biases = init_params(key)

    # One-time parameter packing / padding (amortized over all forward calls).
    w_packed, b_packed = jax.block_until_ready(prepare_params(weights, biases))

    fwd = jax.jit(gesture_detector_forward)
    out = jax.block_until_ready(fwd(x, w_packed, b_packed))

    ref = reference_forward(x, weights, biases)              # f32 reference
    assert out.shape == (B, DIMS[-1]), out.shape
    max_err = float(jnp.max(jnp.abs(out - ref)))
    # bf16 matmul operands with f32 accumulation -> allow small quantization error.
    assert jnp.allclose(out, ref, atol=3e-2, rtol=3e-2), f"max err {max_err}"

    print("KERNEL_OK")
</pallas_src>

<mosaic_0001>
module attributes {stable_mosaic.version = 11 : i64} {
  func.func @mlp_kernel(%arg0: i32, %arg1: memref<8x128xbf16, #tpu.memory_space<vmem>>, %arg2: memref<8x128x128xbf16, #tpu.memory_space<vmem>>, %arg3: memref<8x128xf32, #tpu.memory_space<vmem>>, %arg4: memref<8x128xf32, #tpu.memory_space<vmem>>) attributes {dimension_semantics = [#tpu.dimension_semantics<parallel>], iteration_bounds = array<i64: 1>, scalar_prefetch = 0 : i64, scratch_operands = 0 : i64, tpu.core_type = #tpu.core_type<tc>, window_params = [{transform_indices = @transform_0, window_bounds = array<i64: 8, 128>}, {pipeline_mode = #tpu.pipeline_mode<synchronous>, transform_indices = @transform_1, window_bounds = array<i64: 8, 128, 128>}, {pipeline_mode = #tpu.pipeline_mode<synchronous>, transform_indices = @transform_2, window_bounds = array<i64: 8, 128>}, {transform_indices = @transform_3, window_bounds = array<i64: 8, 128>}]} {
    %c0 = arith.constant 0 : index
    %c0_0 = arith.constant 0 : index
    %0 = vector.load %arg1[%c0, %c0_0] : memref<8x128xbf16, #tpu.memory_space<vmem>>, vector<8x128xbf16>
    %c0_1 = arith.constant 0 : index
    %c0_2 = arith.constant 0 : index
    %c0_3 = arith.constant 0 : index
    %1 = vector.load %arg2[%c0_1, %c0_2, %c0_3] : memref<8x128x128xbf16, #tpu.memory_space<vmem>>, vector<1x128x128xbf16>
    %2 = vector.shape_cast %1 : vector<1x128x128xbf16> to vector<128x128xbf16>
    %cst = arith.constant dense<0.000000e+00> : vector<8x128xf32>
    %3 = tpu.matmul %0, %2, %cst {dimension_numbers = #tpu.dot_dimension_numbers<[1], [0], [0], [1], [0, 0, 1, 1], [], []>} : vector<8x128xbf16>, vector<128x128xbf16>, vector<8x128xf32> -> vector<8x128xf32>
    %c0_4 = arith.constant 0 : index
    %c0_5 = arith.constant 0 : index
    %4 = vector.load %arg3[%c0_4, %c0_5] : memref<8x128xf32, #tpu.memory_space<vmem>>, vector<1x128xf32>
    %5 = vector.broadcast %4 : vector<1x128xf32> to vector<8x128xf32>
    %6 = arith.addf %3, %5 : vector<8x128xf32>
    %7 = arith.truncf %6 : vector<8x128xf32> to vector<8x128xbf16>
    %c1 = arith.constant 1 : index
    %c0_6 = arith.constant 0 : index
    %c0_7 = arith.constant 0 : index
    %8 = vector.load %arg2[%c1, %c0_6, %c0_7] : memref<8x128x128xbf16, #tpu.memory_space<vmem>>, vector<1x128x128xbf16>
    %9 = vector.shape_cast %8 : vector<1x128x128xbf16> to vector<128x128xbf16>
    %cst_8 = arith.constant dense<0.000000e+00> : vector<8x128xf32>
    %10 = tpu.matmul %7, %9, %cst_8 {dimension_numbers = #tpu.dot_dimension_numbers<[1], [0], [0], [1], [0, 0, 1, 1], [], []>} : vector<8x128xbf16>, vector<128x128xbf16>, vector<8x128xf32> -> vector<8x128xf32>
    %c1_9 = arith.constant 1 : index
    %c0_10 = arith.constant 0 : index
    %11 = vector.load %arg3[%c1_9, %c0_10] : memref<8x128xf32, #tpu.memory_space<vmem>>, vector<1x128xf32>
    %12 = vector.broadcast %11 : vector<1x128xf32> to vector<8x128xf32>
    %13 = arith.addf %10, %12 : vector<8x128xf32>
    %14 = arith.truncf %13 : vector<8x128xf32> to vector<8x128xbf16>
    %c2 = arith.constant 2 : index
    %c0_11 = arith.constant 0 : index
    %c0_12 = arith.constant 0 : index
    %15 = vector.load %arg2[%c2, %c0_11, %c0_12] : memref<8x128x128xbf16, #tpu.memory_space<vmem>>, vector<1x128x128xbf16>
    %16 = vector.shape_cast %15 : vector<1x128x128xbf16> to vector<128x128xbf16>
    %cst_13 = arith.constant dense<0.000000e+00> : vector<8x128xf32>
    %17 = tpu.matmul %14, %16, %cst_13 {dimension_numbers = #tpu.dot_dimension_numbers<[1], [0], [0], [1], [0, 0, 1, 1], [], []>} : vector<8x128xbf16>, vector<128x128xbf16>, vector<8x128xf32> -> vector<8x128xf32>
    %c2_14 = arith.constant 2 : index
    %c0_15 = arith.constant 0 : index
    %18 = vector.load %arg3[%c2_14, %c0_15] : memref<8x128xf32, #tpu.memory_space<vmem>>, vector<1x128xf32>
    %19 = vector.broadcast %18 : vector<1x128xf32> to vector<8x128xf32>
    %20 = arith.addf %17, %19 : vector<8x128xf32>
    %21 = arith.truncf %20 : vector<8x128xf32> to vector<8x128xbf16>
    %c3 = arith.constant 3 : index
    %c0_16 = arith.constant 0 : index
    %c0_17 = arith.constant 0 : index
    %22 = vector.load %arg2[%c3, %c0_16, %c0_17] : memref<8x128x128xbf16, #tpu.memory_space<vmem>>, vector<1x128x128xbf16>
    %23 = vector.shape_cast %22 : vector<1x128x128xbf16> to vector<128x128xbf16>
    %cst_18 = arith.constant dense<0.000000e+00> : vector<8x128xf32>
    %24 = tpu.matmul %21, %23, %cst_18 {dimension_numbers = #tpu.dot_dimension_numbers<[1], [0], [0], [1], [0, 0, 1, 1], [], []>} : vector<8x128xbf16>, vector<128x128xbf16>, vector<8x128xf32> -> vector<8x128xf32>
    %c3_19 = arith.constant 3 : index
    %c0_20 = arith.constant 0 : index
    %25 = vector.load %arg3[%c3_19, %c0_20] : memref<8x128xf32, #tpu.memory_space<vmem>>, vector<1x128xf32>
    %26 = vector.broadcast %25 : vector<1x128xf32> to vector<8x128xf32>
    %27 = arith.addf %24, %26 : vector<8x128xf32>
    %28 = arith.truncf %27 : vector<8x128xf32> to vector<8x128xbf16>
    %c4 = arith.constant 4 : index
    %c0_21 = arith.constant 0 : index
    %c0_22 = arith.constant 0 : index
    %29 = vector.load %arg2[%c4, %c0_21, %c0_22] : memref<8x128x128xbf16, #tpu.memory_space<vmem>>, vector<1x128x128xbf16>
    %30 = vector.shape_cast %29 : vector<1x128x128xbf16> to vector<128x128xbf16>
    %cst_23 = arith.constant dense<0.000000e+00> : vector<8x128xf32>
    %31 = tpu.matmul %28, %30, %cst_23 {dimension_numbers = #tpu.dot_dimension_numbers<[1], [0], [0], [1], [0, 0, 1, 1], [], []>} : vector<8x128xbf16>, vector<128x128xbf16>, vector<8x128xf32> -> vector<8x128xf32>
    %c4_24 = arith.constant 4 : index
    %c0_25 = arith.constant 0 : index
    %32 = vector.load %arg3[%c4_24, %c0_25] : memref<8x128xf32, #tpu.memory_space<vmem>>, vector<1x128xf32>
    %33 = vector.broadcast %32 : vector<1x128xf32> to vector<8x128xf32>
    %34 = arith.addf %31, %33 : vector<8x128xf32>
    %35 = arith.truncf %34 : vector<8x128xf32> to vector<8x128xbf16>
    %c5 = arith.constant 5 : index
    %c0_26 = arith.constant 0 : index
    %c0_27 = arith.constant 0 : index
    %36 = vector.load %arg2[%c5, %c0_26, %c0_27] : memref<8x128x128xbf16, #tpu.memory_space<vmem>>, vector<1x128x128xbf16>
    %37 = vector.shape_cast %36 : vector<1x128x128xbf16> to vector<128x128xbf16>
    %cst_28 = arith.constant dense<0.000000e+00> : vector<8x128xf32>
    %38 = tpu.matmul %35, %37, %cst_28 {dimension_numbers = #tpu.dot_dimension_numbers<[1], [0], [0], [1], [0, 0, 1, 1], [], []>} : vector<8x128xbf16>, vector<128x128xbf16>, vector<8x128xf32> -> vector<8x128xf32>
    %c5_29 = arith.constant 5 : index
    %c0_30 = arith.constant 0 : index
    %39 = vector.load %arg3[%c5_29, %c0_30] : memref<8x128xf32, #tpu.memory_space<vmem>>, vector<1x128xf32>
    %40 = vector.broadcast %39 : vector<1x128xf32> to vector<8x128xf32>
    %41 = arith.addf %38, %40 : vector<8x128xf32>
    %42 = arith.truncf %41 : vector<8x128xf32> to vector<8x128xbf16>
    %c6 = arith.constant 6 : index
    %c0_31 = arith.constant 0 : index
    %c0_32 = arith.constant 0 : index
    %43 = vector.load %arg2[%c6, %c0_31, %c0_32] : memref<8x128x128xbf16, #tpu.memory_space<vmem>>, vector<1x128x128xbf16>
    %44 = vector.shape_cast %43 : vector<1x128x128xbf16> to vector<128x128xbf16>
    %cst_33 = arith.constant dense<0.000000e+00> : vector<8x128xf32>
    %45 = tpu.matmul %42, %44, %cst_33 {dimension_numbers = #tpu.dot_dimension_numbers<[1], [0], [0], [1], [0, 0, 1, 1], [], []>} : vector<8x128xbf16>, vector<128x128xbf16>, vector<8x128xf32> -> vector<8x128xf32>
    %c6_34 = arith.constant 6 : index
    %c0_35 = arith.constant 0 : index
    %46 = vector.load %arg3[%c6_34, %c0_35] : memref<8x128xf32, #tpu.memory_space<vmem>>, vector<1x128xf32>
    %47 = vector.broadcast %46 : vector<1x128xf32> to vector<8x128xf32>
    %48 = arith.addf %45, %47 : vector<8x128xf32>
    %49 = arith.truncf %48 : vector<8x128xf32> to vector<8x128xbf16>
    %c7 = arith.constant 7 : index
    %c0_36 = arith.constant 0 : index
    %c0_37 = arith.constant 0 : index
    %50 = vector.load %arg2[%c7, %c0_36, %c0_37] : memref<8x128x128xbf16, #tpu.memory_space<vmem>>, vector<1x128x128xbf16>
    %51 = vector.shape_cast %50 : vector<1x128x128xbf16> to vector<128x128xbf16>
    %cst_38 = arith.constant dense<0.000000e+00> : vector<8x128xf32>
    %52 = tpu.matmul %49, %51, %cst_38 {dimension_numbers = #tpu.dot_dimension_numbers<[1], [0], [0], [1], [0, 0, 1, 1], [], []>} : vector<8x128xbf16>, vector<128x128xbf16>, vector<8x128xf32> -> vector<8x128xf32>
    %c7_39 = arith.constant 7 : index
    %c0_40 = arith.constant 0 : index
    %53 = vector.load %arg3[%c7_39, %c0_40] : memref<8x128xf32, #tpu.memory_space<vmem>>, vector<1x128xf32>
    %54 = vector.broadcast %53 : vector<1x128xf32> to vector<8x128xf32>
    %55 = arith.addf %52, %54 : vector<8x128xf32>
    %c0_41 = arith.constant 0 : index
    %c0_42 = arith.constant 0 : index
    %56 = vector.load %arg4[%c0_41, %c0_42] : memref<8x128xf32, #tpu.memory_space<vmem>>, vector<8x128xf32>
    tpu.vector_store %arg4[%c0_41, %c0_42], %55 {strides = array<i32>} : memref<8x128xf32, #tpu.memory_space<vmem>>, vector<8x128xf32>,
    return
  }
  func.func @transform_0(%arg0: i32) -> (i32, i32) {
    %c0_i32 = arith.constant 0 : i32
    %c0_i32_0 = arith.constant 0 : i32
    return %arg0, %c0_i32 : i32, i32
  }
  func.func @transform_1(%arg0: i32) -> (i32, i32, i32) {
    %c0_i32 = arith.constant 0 : i32
    %c0_i32_0 = arith.constant 0 : i32
    %c0_i32_1 = arith.constant 0 : i32
    %c0_i32_2 = arith.constant 0 : i32
    return %c0_i32, %c0_i32_0, %c0_i32_1 : i32, i32, i32
  }
  func.func @transform_2(%arg0: i32) -> (i32, i32) {
    %c0_i32 = arith.constant 0 : i32
    %c0_i32_0 = arith.constant 0 : i32
    %c0_i32_1 = arith.constant 0 : i32
    return %c0_i32, %c0_i32_0 : i32, i32
  }
  func.func @transform_3(%arg0: i32) -> (i32, i32) {
    %c0_i32 = arith.constant 0 : i32
    %c0_i32_0 = arith.constant 0 : i32
    return %arg0, %c0_i32 : i32, i32
  }
}

</mosaic_0001>

<llo_original>
// kernel: gesture_detector_forward.1
$region0: #{gesture_detector_forward.1}
  #allocation0 [shape = 'u32[]', space=smem, size = 0x4, offset = 0x4, fixed_abs, tag = 'smem constant byte address 0x4 - core index']
  #allocation1 [shape = 'u32[144,128]{1,0:T(1,128)}', space=vmem, size = 0x12000, scoped, tag = 'internal scratch']
  %s0 = inlined_call_operand.vmem [shape: bf16[8,128], index: 0, kind: input, shape index: {}]
  %s1 = inlined_call_operand.hbm [shape: bf16[8,128,128], index: 1, kind: input, shape index: {}]
  %s2 = inlined_call_operand.vmem [shape: f32[8,128], index: 2, kind: input, shape index: {}]
  %s3 = inlined_call_operand.vmem [shape: f32[8,128], index: 3, kind: output, shape index: {}]
  %s4 = sld [smem:[#allocation0]]
  $region26: #{gesture_detector_forward.1} parent=0
    _
  %s6 = ssub.s32 1, %s4
  %s7 = scalar_select 0, %s6, %s4
  $region1: #{gesture_detector_forward.1} parent=0
    #allocation2 [shape = 'u8[262144]{0}', space=vmem, size = 0x40000, scoped, tag = 'input window, operand 1, single buffered']
    #allocation3 [shape = 's32[1]{0}', space=sflag, size = 0x4, scoped, tag = 'scoped memory for gesture_detector_forward.1']
    %8 = vsyncpa [#allocation3], 0
    // Predicated region
    $region2: #{gesture_detector_forward.1} parent=1 // pred_check
      _
    $region3: #{gesture_detector_forward.1} parent=1 // pred_check_branch
      %10 = sbr.rel (0) target = $region5
    $region4: #{gesture_detector_forward.1} parent=1 // pred_region
      _
    $region5: #{gesture_detector_forward.1} parent=1 // pred_fallthru
      _
    // Predicated region
    $region6: #{gesture_detector_forward.1} parent=1 // pred_check
      _
    $region7: #{gesture_detector_forward.1} parent=1 // pred_check_branch
      %12 = sbr.rel (0) target = $region9
    $region8: #{gesture_detector_forward.1} parent=1 // pred_region
      %s14 = ssub.s32 8192, 8192
      %15 = vsyncadd [#allocation3], %s14
      %s16 = sshll.u32 [#allocation2], 4
      %s17 = int_to_ptr.vmem [resolvable:$true] %s16
      %22 = dma.hbm_to_vmem [thread:$0]  %s1, 8192, %s17, [#allocation3], 64, 64, 4
    $region9: #{gesture_detector_forward.1} parent=1 // pred_fallthru
      _
    // Predicated region
    $region10: #{gesture_detector_forward.1} parent=1 // pred_check
      _
    $region11: #{gesture_detector_forward.1} parent=1 // pred_check_branch
      %24 = sbr.rel (0) target = $region13
    $region12: #{gesture_detector_forward.1} parent=1 // pred_region
      _
    $region13: #{gesture_detector_forward.1} parent=1 // pred_fallthru
      _
    // Predicated region
    $region14: #{gesture_detector_forward.1} parent=1 // pred_check
      _
    $region15: #{gesture_detector_forward.1} parent=1 // pred_check_branch
      %26 = sbr.rel (0) target = $region17
    $region16: #{gesture_detector_forward.1} parent=1 // pred_region
      %27 = dma.done [#allocation3], 8192
    $region17: #{gesture_detector_forward.1} parent=1 // pred_fallthru
      _
    %v29 = vld [vmem:[%s0] sm:$0xf]
    %v30 = vld [vmem:[#allocation2] sm:$0xf]
    %v31 = vld [vmem:[#allocation2 + $0x4] sm:$0xf]
    %v32 = vld [vmem:[#allocation2 + $0x8] sm:$0xf]
    %v33 = vld [vmem:[#allocation2 + $0xc] sm:$0xf]
    %v34 = vld [vmem:[#allocation2 + $0x10] sm:$0xf]
    %v35 = vld [vmem:[#allocation2 + $0x14] sm:$0xf]
    %v36 = vld [vmem:[#allocation2 + $0x18] sm:$0xf]
    %v37 = vld [vmem:[#allocation2 + $0x1c] sm:$0xf]
    %v38 = vld [vmem:[#allocation2 + $0x20] sm:$0xf]
    %v39 = vld [vmem:[#allocation2 + $0x24] sm:$0xf]
    %v40 = vld [vmem:[#allocation2 + $0x28] sm:$0xf]
    %v41 = vld [vmem:[#allocation2 + $0x2c] sm:$0xf]
    %v42 = vld [vmem:[#allocation2 + $0x30] sm:$0xf]
    %v43 = vld [vmem:[#allocation2 + $0x34] sm:$0xf]
    %v44 = vld [vmem:[#allocation2 + $0x38] sm:$0xf]
    %v45 = vld [vmem:[#allocation2 + $0x3c] sm:$0xf]
    %v46 = vld [vmem:[%s2] sm:$0x1]
    %v47 = vlaneseq
    %v48 = vshrl.u32 %v47, 7
    %v49 = vsub.s32 0, %v48
    %v50 = vrot.slane %v46, %v49
    %v67 = vunpack.c.l.b16 %v30
    %v68 = vunpack.c.l.b16 %v31
    %v69 = vunpack.c.l.b16 %v32
    %v70 = vunpack.c.l.b16 %v33
    %v71 = vunpack.c.l.b16 %v34
    %v72 = vunpack.c.l.b16 %v35
    %v73 = vunpack.c.l.b16 %v36
    %v74 = vunpack.c.l.b16 %v37
    %v75 = vunpack.c.l.b16 %v38
    %v76 = vunpack.c.l.b16 %v39
    %v77 = vunpack.c.l.b16 %v40
    %v78 = vunpack.c.l.b16 %v41
    %v79 = vunpack.c.l.b16 %v42
    %v80 = vunpack.c.l.b16 %v43
    %v81 = vunpack.c.l.b16 %v44
    %v82 = vunpack.c.l.b16 %v45
    %v83 = vpack.c.b16 %v68, %v67
    %v84 = vpack.c.b16 %v70, %v69
    %v85 = vpack.c.b16 %v72, %v71
    %v86 = vpack.c.b16 %v74, %v73
    %v87 = vpack.c.b16 %v76, %v75
    %v88 = vpack.c.b16 %v78, %v77
    %v89 = vpack.c.b16 %v80, %v79
    %v90 = vpack.c.b16 %v82, %v81
    %99 = vmatprep.subr.bf16.mxu0 0
    %100 = vmatpush1.bf16.msra.mxu0 %v83
    %101 = vmatprep.subr.bf16.mxu0 0
    %102 = vmatpush1.bf16.msra.mxu0 %v84
    %103 = vmatprep.subr.bf16.mxu0 0
    %104 = vmatpush1.bf16.msra.mxu0 %v85
    %105 = vmatprep.subr.bf16.mxu0 0
    %106 = vmatpush1.bf16.msra.mxu0 %v86
    %107 = vmatprep.subr.bf16.mxu0 0
    %108 = vmatpush1.bf16.msra.mxu0 %v87
    %109 = vmatprep.subr.bf16.mxu0 0
    %110 = vmatpush1.bf16.msra.mxu0 %v88
    %111 = vmatprep.subr.bf16.mxu0 0
    %112 = vmatpush1.bf16.msra.mxu0 %v89
    %113 = vmatprep.subr.bf16.mxu0 0
    %114 = vmatpush1.bf16.msra.mxu0 %v90
    %115 = vmatprep.subr.bf16.mxu0 0
    %116 = vmatpush1.bf16.msra.mxu0 0
    %117 = vmatprep.subr.bf16.mxu0 0
    %118 = vmatpush1.bf16.msra.mxu0 0
    %119 = vmatprep.subr.bf16.mxu0 0
    %120 = vmatpush1.bf16.msra.mxu0 0
    %121 = vmatprep.subr.bf16.mxu0 0
    %122 = vmatpush1.bf16.msra.mxu0 0
    %123 = vmatprep.subr.bf16.mxu0 0
    %124 = vmatpush1.bf16.msra.mxu0 0
    %125 = vmatprep.subr.bf16.mxu0 0
    %126 = vmatpush1.bf16.msra.mxu0 0
    %127 = vmatprep.subr.bf16.mxu0 0
    %128 = vmatpush1.bf16.msra.mxu0 0
    %129 = vmatprep.subr.bf16.mxu0 0
    %130 = vmatpush1.bf16.msra.mxu0 0
    %131 = vmatprep.mubr.bf16.mxu0 0
    %132 = vmatmul.mubr.bf16.gmra.mrb[0].mxu0 %v29
    %v133 = vpop.f32.mrb[0].mxu0
    %v134 = vadd.f32 %v50, %v133
    %v135 = vpop.f32.mrb[0].mxu0
    %v136 = vpop.f32.mrb[0].mxu0
    %v137 = vpop.f32.mrb[0].mxu0
    %138 = vdwg.mxu0
    %v139 = vpack.c.bf16 %v134, %v134
    %s140 = scalar_lea.vmem [#allocation2], 64
    %v141 = vld [vmem:[%s140] sm:$0xf]
    %v142 = vld [vmem:[%s140 + $0x4] sm:$0xf]
    %v143 = vld [vmem:[%s140 + $0x8] sm:$0xf]
    %v144 = vld [vmem:[%s140 + $0xc] sm:$0xf]
    %v145 = vld [vmem:[%s140 + $0x10] sm:$0xf]
    %v146 = vld [vmem:[%s140 + $0x14] sm:$0xf]
    %v147 = vld [vmem:[%s140 + $0x18] sm:$0xf]
    %v148 = vld [vmem:[%s140 + $0x1c] sm:$0xf]
    %v149 = vld [vmem:[%s140 + $0x20] sm:$0xf]
    %v150 = vld [vmem:[%s140 + $0x24] sm:$0xf]
    %v151 = vld [vmem:[%s140 + $0x28] sm:$0xf]
    %v152 = vld [vmem:[%s140 + $0x2c] sm:$0xf]
    %v153 = vld [vmem:[%s140 + $0x30] sm:$0xf]
    %v154 = vld [vmem:[%s140 + $0x34] sm:$0xf]
    %v155 = vld [vmem:[%s140 + $0x38] sm:$0xf]
    %v156 = vld [vmem:[%s140 + $0x3c] sm:$0xf]
    %v157 = vld [vmem:[%s2 + $0x1] sm:$0x1]
    %v158 = vlaneseq
    %v159 = vshrl.u32 %v158, 7
    %v160 = vsub.s32 0, %v159
    %v161 = vrot.slane %v157, %v160
    %v178 = vunpack.c.l.b16 %v141
    %v179 = vunpack.c.l.b16 %v142
    %v180 = vunpack.c.l.b16 %v143
    %v181 = vunpack.c.l.b16 %v144
    %v182 = vunpack.c.l.b16 %v145
    %v183 = vunpack.c.l.b16 %v146
    %v184 = vunpack.c.l.b16 %v147
    %v185 = vunpack.c.l.b16 %v148
    %v186 = vunpack.c.l.b16 %v149
    %v187 = vunpack.c.l.b16 %v150
    %v188 = vunpack.c.l.b16 %v151
    %v189 = vunpack.c.l.b16 %v152
    %v190 = vunpack.c.l.b16 %v153
    %v191 = vunpack.c.l.b16 %v154
    %v192 = vunpack.c.l.b16 %v155
    %v193 = vunpack.c.l.b16 %v156
    %v194 = vpack.c.b16 %v179, %v178
    %v195 = vpack.c.b16 %v181, %v180
    %v196 = vpack.c.b16 %v183, %v182
    %v197 = vpack.c.b16 %v185, %v184
    %v198 = vpack.c.b16 %v187, %v186
    %v199 = vpack.c.b16 %v189, %v188
    %v200 = vpack.c.b16 %v191, %v190
    %v201 = vpack.c.b16 %v193, %v192
    %210 = vmatprep.subr.bf16.mxu0 0
    %211 = vmatpush1.bf16.msra.mxu0 %v194
    %212 = vmatprep.subr.bf16.mxu0 0
    %213 = vmatpush1.bf16.msra.mxu0 %v195
    %214 = vmatprep.subr.bf16.mxu0 0
    %215 = vmatpush1.bf16.msra.mxu0 %v196
    %216 = vmatprep.subr.bf16.mxu0 0
    %217 = vmatpush1.bf16.msra.mxu0 %v197
    %218 = vmatprep.subr.bf16.mxu0 0
    %219 = vmatpush1.bf16.msra.mxu0 %v198
    %220 = vmatprep.subr.bf16.mxu0 0
    %221 = vmatpush1.bf16.msra.mxu0 %v199
    %222 = vmatprep.subr.bf16.mxu0 0
    %223 = vmatpush1.bf16.msra.mxu0 %v200
    %224 = vmatprep.subr.bf16.mxu0 0
    %225 = vmatpush1.bf16.msra.mxu0 %v201
    %226 = vmatprep.subr.bf16.mxu0 0
    %227 = vmatpush1.bf16.msra.mxu0 0
    %228 = vmatprep.subr.bf16.mxu0 0
    %229 = vmatpush1.bf16.msra.mxu0 0
    %230 = vmatprep.subr.bf16.mxu0 0
    %231 = vmatpush1.bf16.msra.mxu0 0
    %232 = vmatprep.subr.bf16.mxu0 0
    %233 = vmatpush1.bf16.msra.mxu0 0
    %234 = vmatprep.subr.bf16.mxu0 0
    %235 = vmatpush1.bf16.msra.mxu0 0
    %236 = vmatprep.subr.bf16.mxu0 0
    %237 = vmatpush1.bf16.msra.mxu0 0
    %238 = vmatprep.subr.bf16.mxu0 0
    %239 = vmatpush1.bf16.msra.mxu0 0
    %240 = vmatprep.subr.bf16.mxu0 0
    %241 = vmatpush1.bf16.msra.mxu0 0
    %242 = vmatprep.mubr.bf16.mxu0 0
    %243 = vmatmul.mubr.bf16.gmra.mrb[0].mxu0 %v139
    %v244 = vpop.f32.mrb[0].mxu0
    %v245 = vadd.f32 %v161, %v244
    %v246 = vpop.f32.mrb[0].mxu0
    %v247 = vpop.f32.mrb[0].mxu0
    %v248 = vpop.f32.mrb[0].mxu0
    %249 = vdwg.mxu0
    %v250 = vpack.c.bf16 %v245, %v245
    %s251 = scalar_lea.vmem [#allocation2], 128
    %v252 = vld [vmem:[%s251] sm:$0xf]
    %v253 = vld [vmem:[%s251 + $0x4] sm:$0xf]
    %v254 = vld [vmem:[%s251 + $0x8] sm:$0xf]
    %v255 = vld [vmem:[%s251 + $0xc] sm:$0xf]
    %v256 = vld [vmem:[%s251 + $0x10] sm:$0xf]
    %v257 = vld [vmem:[%s251 + $0x14] sm:$0xf]
    %v258 = vld [vmem:[%s251 + $0x18] sm:$0xf]
    %v259 = vld [vmem:[%s251 + $0x1c] sm:$0xf]
    %v260 = vld [vmem:[%s251 + $0x20] sm:$0xf]
    %v261 = vld [vmem:[%s251 + $0x24] sm:$0xf]
    %v262 = vld [vmem:[%s251 + $0x28] sm:$0xf]
    %v263 = vld [vmem:[%s251 + $0x2c] sm:$0xf]
    %v264 = vld [vmem:[%s251 + $0x30] sm:$0xf]
    %v265 = vld [vmem:[%s251 + $0x34] sm:$0xf]
    %v266 = vld [vmem:[%s251 + $0x38] sm:$0xf]
    %v267 = vld [vmem:[%s251 + $0x3c] sm:$0xf]
    %v268 = vld [vmem:[%s2 + $0x2] sm:$0x1]
    %v269 = vlaneseq
    %v270 = vshrl.u32 %v269, 7
    %v271 = vsub.s32 0, %v270
    %v272 = vrot.slane %v268, %v271
    %v289 = vunpack.c.l.b16 %v252
    %v290 = vunpack.c.l.b16 %v253
    %v291 = vunpack.c.l.b16 %v254
    %v292 = vunpack.c.l.b16 %v255
    %v293 = vunpack.c.l.b16 %v256
    %v294 = vunpack.c.l.b16 %v257
    %v295 = vunpack.c.l.b16 %v258
    %v296 = vunpack.c.l.b16 %v259
    %v297 = vunpack.c.l.b16 %v260
    %v298 = vunpack.c.l.b16 %v261
    %v299 = vunpack.c.l.b16 %v262
    %v300 = vunpack.c.l.b16 %v263
    %v301 = vunpack.c.l.b16 %v264
    %v302 = vunpack.c.l.b16 %v265
    %v303 = vunpack.c.l.b16 %v266
    %v304 = vunpack.c.l.b16 %v267
    %v305 = vpack.c.b16 %v290, %v289
    %v306 = vpack.c.b16 %v292, %v291
    %v307 = vpack.c.b16 %v294, %v293
    %v308 = vpack.c.b16 %v296, %v295
    %v309 = vpack.c.b16 %v298, %v297
    %v310 = vpack.c.b16 %v300, %v299
    %v311 = vpack.c.b16 %v302, %v301
    %v312 = vpack.c.b16 %v304, %v303
    %321 = vmatprep.subr.bf16.mxu0 0
    %322 = vmatpush1.bf16.msra.mxu0 %v305
    %323 = vmatprep.subr.bf16.mxu0 0
    %324 = vmatpush1.bf16.msra.mxu0 %v306
    %325 = vmatprep.subr.bf16.mxu0 0
    %326 = vmatpush1.bf16.msra.mxu0 %v307
    %327 = vmatprep.subr.bf16.mxu0 0
    %328 = vmatpush1.bf16.msra.mxu0 %v308
    %329 = vmatprep.subr.bf16.mxu0 0
    %330 = vmatpush1.bf16.msra.mxu0 %v309
    %331 = vmatprep.subr.bf16.mxu0 0
    %332 = vmatpush1.bf16.msra.mxu0 %v310
    %333 = vmatprep.subr.bf16.mxu0 0
    %334 = vmatpush1.bf16.msra.mxu0 %v311
    %335 = vmatprep.subr.bf16.mxu0 0
    %336 = vmatpush1.bf16.msra.mxu0 %v312
    %337 = vmatprep.subr.bf16.mxu0 0
    %338 = vmatpush1.bf16.msra.mxu0 0
    %339 = vmatprep.subr.bf16.mxu0 0
    %340 = vmatpush1.bf16.msra.mxu0 0
    %341 = vmatprep.subr.bf16.mxu0 0
    %342 = vmatpush1.bf16.msra.mxu0 0
    %343 = vmatprep.subr.bf16.mxu0 0
    %344 = vmatpush1.bf16.msra.mxu0 0
    %345 = vmatprep.subr.bf16.mxu0 0
    %346 = vmatpush1.bf16.msra.mxu0 0
    %347 = vmatprep.subr.bf16.mxu0 0
    %348 = vmatpush1.bf16.msra.mxu0 0
    %349 = vmatprep.subr.bf16.mxu0 0
    %350 = vmatpush1.bf16.msra.mxu0 0
    %351 = vmatprep.subr.bf16.mxu0 0
    %352 = vmatpush1.bf16.msra.mxu0 0
    %353 = vmatprep.mubr.bf16.mxu0 0
    %354 = vmatmul.mubr.bf16.gmra.mrb[0].mxu0 %v250
    %v355 = vpop.f32.mrb[0].mxu0
    %v356 = vadd.f32 %v272, %v355
    %v357 = vpop.f32.mrb[0].mxu0
    %v358 = vpop.f32.mrb[0].mxu0
    %v359 = vpop.f32.mrb[0].mxu0
    %360 = vdwg.mxu0
    %v361 = vpack.c.bf16 %v356, %v356
    %s362 = scalar_lea.vmem [#allocation2], 192
    %v363 = vld [vmem:[%s362] sm:$0xf]
    %v364 = vld [vmem:[%s362 + $0x4] sm:$0xf]
    %v365 = vld [vmem:[%s362 + $0x8] sm:$0xf]
    %v366 = vld [vmem:[%s362 + $0xc] sm:$0xf]
    %v367 = vld [vmem:[%s362 + $0x10] sm:$0xf]
    %v368 = vld [vmem:[%s362 + $0x14] sm:$0xf]
    %v369 = vld [vmem:[%s362 + $0x18] sm:$0xf]
    %v370 = vld [vmem:[%s362 + $0x1c] sm:$0xf]
    %v371 = vld [vmem:[%s362 + $0x20] sm:$0xf]
    %v372 = vld [vmem:[%s362 + $0x24] sm:$0xf]
    %v373 = vld [vmem:[%s362 + $0x28] sm:$0xf]
    %v374 = vld [vmem:[%s362 + $0x2c] sm:$0xf]
    %v375 = vld [vmem:[%s362 + $0x30] sm:$0xf]
    %v376 = vld [vmem:[%s362 + $0x34] sm:$0xf]
    %v377 = vld [vmem:[%s362 + $0x38] sm:$0xf]
    %v378 = vld [vmem:[%s362 + $0x3c] sm:$0xf]
    %v379 = vld [vmem:[%s2 + $0x3] sm:$0x1]
    %v380 = vlaneseq
    %v381 = vshrl.u32 %v380, 7
    %v382 = vsub.s32 0, %v381
    %v383 = vrot.slane %v379, %v382
    %v400 = vunpack.c.l.b16 %v363
    %v401 = vunpack.c.l.b16 %v364
    %v402 = vunpack.c.l.b16 %v365
    %v403 = vunpack.c.l.b16 %v366
    %v404 = vunpack.c.l.b16 %v367
    %v405 = vunpack.c.l.b16 %v368
    %v406 = vunpack.c.l.b16 %v369
    %v407 = vunpack.c.l.b16 %v370
    %v408 = vunpack.c.l.b16 %v371
    %v409 = vunpack.c.l.b16 %v372
    %v410 = vunpack.c.l.b16 %v373
    %v411 = vunpack.c.l.b16 %v374
    %v412 = vunpack.c.l.b16 %v375
    %v413 = vunpack.c.l.b16 %v376
    %v414 = vunpack.c.l.b16 %v377
    %v415 = vunpack.c.l.b16 %v378
    %v416 = vpack.c.b16 %v401, %v400
    %v417 = vpack.c.b16 %v403, %v402
    %v418 = vpack.c.b16 %v405, %v404
    %v419 = vpack.c.b16 %v407, %v406
    %v420 = vpack.c.b16 %v409, %v408
    %v421 = vpack.c.b16 %v411, %v410
    %v422 = vpack.c.b16 %v413, %v412
    %v423 = vpack.c.b16 %v415, %v414
    %432 = vmatprep.subr.bf16.mxu0 0
    %433 = vmatpush1.bf16.msra.mxu0 %v416
    %434 = vmatprep.subr.bf16.mxu0 0
    %435 = vmatpush1.bf16.msra.mxu0 %v417
    %436 = vmatprep.subr.bf16.mxu0 0
    %437 = vmatpush1.bf16.msra.mxu0 %v418
    %438 = vmatprep.subr.bf16.mxu0 0
    %439 = vmatpush1.bf16.msra.mxu0 %v419
    %440 = vmatprep.subr.bf16.mxu0 0
    %441 = vmatpush1.bf16.msra.mxu0 %v420
    %442 = vmatprep.subr.bf16.mxu0 0
    %443 = vmatpush1.bf16.msra.mxu0 %v421
    %444 = vmatprep.subr.bf16.mxu0 0
    %445 = vmatpush1.bf16.msra.mxu0 %v422
    %446 = vmatprep.subr.bf16.mxu0 0
    %447 = vmatpush1.bf16.msra.mxu0 %v423
    %448 = vmatprep.subr.bf16.mxu0 0
    %449 = vmatpush1.bf16.msra.mxu0 0
    %450 = vmatprep.subr.bf16.mxu0 0
    %451 = vmatpush1.bf16.msra.mxu0 0
    %452 = vmatprep.subr.bf16.mxu0 0
    %453 = vmatpush1.bf16.msra.mxu0 0
    %454 = vmatprep.subr.bf16.mxu0 0
    %455 = vmatpush1.bf16.msra.mxu0 0
    %456 = vmatprep.subr.bf16.mxu0 0
    %457 = vmatpush1.bf16.msra.mxu0 0
    %458 = vmatprep.subr.bf16.mxu0 0
    %459 = vmatpush1.bf16.msra.mxu0 0
    %460 = vmatprep.subr.bf16.mxu0 0
    %461 = vmatpush1.bf16.msra.mxu0 0
    %462 = vmatprep.subr.bf16.mxu0 0
    %463 = vmatpush1.bf16.msra.mxu0 0
    %464 = vmatprep.mubr.bf16.mxu0 0
    %465 = vmatmul.mubr.bf16.gmra.mrb[0].mxu0 %v361
    %v466 = vpop.f32.mrb[0].mxu0
    %v467 = vadd.f32 %v383, %v466
    %v468 = vpop.f32.mrb[0].mxu0
    %v469 = vpop.f32.mrb[0].mxu0
    %v470 = vpop.f32.mrb[0].mxu0
    %471 = vdwg.mxu0
    %v472 = vpack.c.bf16 %v467, %v467
    %s473 = scalar_lea.vmem [#allocation2], 256
    %v474 = vld [vmem:[%s473] sm:$0xf]
    %v475 = vld [vmem:[%s473 + $0x4] sm:$0xf]
    %v476 = vld [vmem:[%s473 + $0x8] sm:$0xf]
    %v477 = vld [vmem:[%s473 + $0xc] sm:$0xf]
    %v478 = vld [vmem:[%s473 + $0x10] sm:$0xf]
    %v479 = vld [vmem:[%s473 + $0x14] sm:$0xf]
    %v480 = vld [vmem:[%s473 + $0x18] sm:$0xf]
    %v481 = vld [vmem:[%s473 + $0x1c] sm:$0xf]
    %v482 = vld [vmem:[%s473 + $0x20] sm:$0xf]
    %v483 = vld [vmem:[%s473 + $0x24] sm:$0xf]
    %v484 = vld [vmem:[%s473 + $0x28] sm:$0xf]
    %v485 = vld [vmem:[%s473 + $0x2c] sm:$0xf]
    %v486 = vld [vmem:[%s473 + $0x30] sm:$0xf]
    %v487 = vld [vmem:[%s473 + $0x34] sm:$0xf]
    %v488 = vld [vmem:[%s473 + $0x38] sm:$0xf]
    %v489 = vld [vmem:[%s473 + $0x3c] sm:$0xf]
    %v490 = vld [vmem:[%s2 + $0x4] sm:$0x1]
    %v491 = vlaneseq
    %v492 = vshrl.u32 %v491, 7
    %v493 = vsub.s32 0, %v492
    %v494 = vrot.slane %v490, %v493
    %v511 = vunpack.c.l.b16 %v474
    %v512 = vunpack.c.l.b16 %v475
    %v513 = vunpack.c.l.b16 %v476
    %v514 = vunpack.c.l.b16 %v477
    %v515 = vunpack.c.l.b16 %v478
    %v516 = vunpack.c.l.b16 %v479
    %v517 = vunpack.c.l.b16 %v480
    %v518 = vunpack.c.l.b16 %v481
    %v519 = vunpack.c.l.b16 %v482
    %v520 = vunpack.c.l.b16 %v483
    %v521 = vunpack.c.l.b16 %v484
    %v522 = vunpack.c.l.b16 %v485
    %v523 = vunpack.c.l.b16 %v486
    %v524 = vunpack.c.l.b16 %v487
    %v525 = vunpack.c.l.b16 %v488
    %v526 = vunpack.c.l.b16 %v489
    %v527 = vpack.c.b16 %v512, %v511
    %v528 = vpack.c.b16 %v514, %v513
    %v529 = vpack.c.b16 %v516, %v515
    %v530 = vpack.c.b16 %v518, %v517
    %v531 = vpack.c.b16 %v520, %v519
    %v532 = vpack.c.b16 %v522, %v521
    %v533 = vpack.c.b16 %v524, %v523
    %v534 = vpack.c.b16 %v526, %v525
    %543 = vmatprep.subr.bf16.mxu0 0
    %544 = vmatpush1.bf16.msra.mxu0 %v527
    %545 = vmatprep.subr.bf16.mxu0 0
    %546 = vmatpush1.bf16.msra.mxu0 %v528
    %547 = vmatprep.subr.bf16.mxu0 0
    %548 = vmatpush1.bf16.msra.mxu0 %v529
    %549 = vmatprep.subr.bf16.mxu0 0
    %550 = vmatpush1.bf16.msra.mxu0 %v530
    %551 = vmatprep.subr.bf16.mxu0 0
    %552 = vmatpush1.bf16.msra.mxu0 %v531
    %553 = vmatprep.subr.bf16.mxu0 0
    %554 = vmatpush1.bf16.msra.mxu0 %v532
    %555 = vmatprep.subr.bf16.mxu0 0
    %556 = vmatpush1.bf16.msra.mxu0 %v533
    %557 = vmatprep.subr.bf16.mxu0 0
    %558 = vmatpush1.bf16.msra.mxu0 %v534
    %559 = vmatprep.subr.bf16.mxu0 0
    %560 = vmatpush1.bf16.msra.mxu0 0
    %561 = vmatprep.subr.bf16.mxu0 0
    %562 = vmatpush1.bf16.msra.mxu0 0
    %563 = vmatprep.subr.bf16.mxu0 0
    %564 = vmatpush1.bf16.msra.mxu0 0
    %565 = vmatprep.subr.bf16.mxu0 0
    %566 = vmatpush1.bf16.msra.mxu0 0
    %567 = vmatprep.subr.bf16.mxu0 0
    %568 = vmatpush1.bf16.msra.mxu0 0
    %569 = vmatprep.subr.bf16.mxu0 0
    %570 = vmatpush1.bf16.msra.mxu0 0
    %571 = vmatprep.subr.bf16.mxu0 0
    %572 = vmatpush1.bf16.msra.mxu0 0
    %573 = vmatprep.subr.bf16.mxu0 0
    %574 = vmatpush1.bf16.msra.mxu0 0
    %575 = vmatprep.mubr.bf16.mxu0 0
    %576 = vmatmul.mubr.bf16.gmra.mrb[0].mxu0 %v472
    %v577 = vpop.f32.mrb[0].mxu0
    %v578 = vadd.f32 %v494, %v577
    %v579 = vpop.f32.mrb[0].mxu0
    %v580 = vpop.f32.mrb[0].mxu0
    %v581 = vpop.f32.mrb[0].mxu0
    %582 = vdwg.mxu0
    %v583 = vpack.c.bf16 %v578, %v578
    %s584 = scalar_lea.vmem [#allocation2], 320
    %v585 = vld [vmem:[%s584] sm:$0xf]
    %v586 = vld [vmem:[%s584 + $0x4] sm:$0xf]
    %v587 = vld [vmem:[%s584 + $0x8] sm:$0xf]
    %v588 = vld [vmem:[%s584 + $0xc] sm:$0xf]
    %v589 = vld [vmem:[%s584 + $0x10] sm:$0xf]
    %v590 = vld [vmem:[%s584 + $0x14] sm:$0xf]
    %v591 = vld [vmem:[%s584 + $0x18] sm:$0xf]
    %v592 = vld [vmem:[%s584 + $0x1c] sm:$0xf]
    %v593 = vld [vmem:[%s584 + $0x20] sm:$0xf]
    %v594 = vld [vmem:[%s584 + $0x24] sm:$0xf]
    %v595 = vld [vmem:[%s584 + $0x28] sm:$0xf]
    %v596 = vld [vmem:[%s584 + $0x2c] sm:$0xf]
    %v597 = vld [vmem:[%s584 + $0x30] sm:$0xf]
    %v598 = vld [vmem:[%s584 + $0x34] sm:$0xf]
    %v599 = vld [vmem:[%s584 + $0x38] sm:$0xf]
    %v600 = vld [vmem:[%s584 + $0x3c] sm:$0xf]
    %v601 = vld [vmem:[%s2 + $0x5] sm:$0x1]
    %v602 = vlaneseq
    %v603 = vshrl.u32 %v602, 7
    %v604 = vsub.s32 0, %v603
    %v605 = vrot.slane %v601, %v604
    %v622 = vunpack.c.l.b16 %v585
    %v623 = vunpack.c.l.b16 %v586
    %v624 = vunpack.c.l.b16 %v587
    %v625 = vunpack.c.l.b16 %v588
    %v626 = vunpack.c.l.b16 %v589
    %v627 = vunpack.c.l.b16 %v590
    %v628 = vunpack.c.l.b16 %v591
    %v629 = vunpack.c.l.b16 %v592
    %v630 = vunpack.c.l.b16 %v593
    %v631 = vunpack.c.l.b16 %v594
    %v632 = vunpack.c.l.b16 %v595
    %v633 = vunpack.c.l.b16 %v596
    %v634 = vunpack.c.l.b16 %v597
    %v635 = vunpack.c.l.b16 %v598
    %v636 = vunpack.c.l.b16 %v599
    %v637 = vunpack.c.l.b16 %v600
    %v638 = vpack.c.b16 %v623, %v622
    %v639 = vpack.c.b16 %v625, %v624
    %v640 = vpack.c.b16 %v627, %v626
    %v641 = vpack.c.b16 %v629, %v628
    %v642 = vpack.c.b16 %v631, %v630
    %v643 = vpack.c.b16 %v633, %v632
    %v644 = vpack.c.b16 %v635, %v634
    %v645 = vpack.c.b16 %v637, %v636
    %654 = vmatprep.subr.bf16.mxu0 0
    %655 = vmatpush1.bf16.msra.mxu0 %v638
    %656 = vmatprep.subr.bf16.mxu0 0
    %657 = vmatpush1.bf16.msra.mxu0 %v639
    %658 = vmatprep.subr.bf16.mxu0 0
    %659 = vmatpush1.bf16.msra.mxu0 %v640
    %660 = vmatprep.subr.bf16.mxu0 0
    %661 = vmatpush1.bf16.msra.mxu0 %v641
    %662 = vmatprep.subr.bf16.mxu0 0
    %663 = vmatpush1.bf16.msra.mxu0 %v642
    %664 = vmatprep.subr.bf16.mxu0 0
    %665 = vmatpush1.bf16.msra.mxu0 %v643
    %666 = vmatprep.subr.bf16.mxu0 0
    %667 = vmatpush1.bf16.msra.mxu0 %v644
    %668 = vmatprep.subr.bf16.mxu0 0
    %669 = vmatpush1.bf16.msra.mxu0 %v645
    %670 = vmatprep.subr.bf16.mxu0 0
    %671 = vmatpush1.bf16.msra.mxu0 0
    %672 = vmatprep.subr.bf16.mxu0 0
    %673 = vmatpush1.bf16.msra.mxu0 0
    %674 = vmatprep.subr.bf16.mxu0 0
    %675 = vmatpush1.bf16.msra.mxu0 0
    %676 = vmatprep.subr.bf16.mxu0 0
    %677 = vmatpush1.bf16.msra.mxu0 0
    %678 = vmatprep.subr.bf16.mxu0 0
    %679 = vmatpush1.bf16.msra.mxu0 0
    %680 = vmatprep.subr.bf16.mxu0 0
    %681 = vmatpush1.bf16.msra.mxu0 0
    %682 = vmatprep.subr.bf16.mxu0 0
    %683 = vmatpush1.bf16.msra.mxu0 0
    %684 = vmatprep.subr.bf16.mxu0 0
    %685 = vmatpush1.bf16.msra.mxu0 0
    %686 = vmatprep.mubr.bf16.mxu0 0
    %687 = vmatmul.mubr.bf16.gmra.mrb[0].mxu0 %v583
    %v688 = vpop.f32.mrb[0].mxu0
    %v689 = vadd.f32 %v605, %v688
    %v690 = vpop.f32.mrb[0].mxu0
    %v691 = vpop.f32.mrb[0].mxu0
    %v692 = vpop.f32.mrb[0].mxu0
    %693 = vdwg.mxu0
    %v694 = vpack.c.bf16 %v689, %v689
    %s695 = scalar_lea.vmem [#allocation2], 384
    %v696 = vld [vmem:[%s695] sm:$0xf]
    %v697 = vld [vmem:[%s695 + $0x4] sm:$0xf]
    %v698 = vld [vmem:[%s695 + $0x8] sm:$0xf]
    %v699 = vld [vmem:[%s695 + $0xc] sm:$0xf]
    %v700 = vld [vmem:[%s695 + $0x10] sm:$0xf]
    %v701 = vld [vmem:[%s695 + $0x14] sm:$0xf]
    %v702 = vld [vmem:[%s695 + $0x18] sm:$0xf]
    %v703 = vld [vmem:[%s695 + $0x1c] sm:$0xf]
    %v704 = vld [vmem:[%s695 + $0x20] sm:$0xf]
    %v705 = vld [vmem:[%s695 + $0x24] sm:$0xf]
    %v706 = vld [vmem:[%s695 + $0x28] sm:$0xf]
    %v707 = vld [vmem:[%s695 + $0x2c] sm:$0xf]
    %v708 = vld [vmem:[%s695 + $0x30] sm:$0xf]
    %v709 = vld [vmem:[%s695 + $0x34] sm:$0xf]
    %v710 = vld [vmem:[%s695 + $0x38] sm:$0xf]
    %v711 = vld [vmem:[%s695 + $0x3c] sm:$0xf]
    %v712 = vld [vmem:[%s2 + $0x6] sm:$0x1]
    %v713 = vlaneseq
    %v714 = vshrl.u32 %v713, 7
    %v715 = vsub.s32 0, %v714
    %v716 = vrot.slane %v712, %v715
    %v733 = vunpack.c.l.b16 %v696
    %v734 = vunpack.c.l.b16 %v697
    %v735 = vunpack.c.l.b16 %v698
    %v736 = vunpack.c.l.b16 %v699
    %v737 = vunpack.c.l.b16 %v700
    %v738 = vunpack.c.l.b16 %v701
    %v739 = vunpack.c.l.b16 %v702
    %v740 = vunpack.c.l.b16 %v703
    %v741 = vunpack.c.l.b16 %v704
    %v742 = vunpack.c.l.b16 %v705
    %v743 = vunpack.c.l.b16 %v706
    %v744 = vunpack.c.l.b16 %v707
    %v745 = vunpack.c.l.b16 %v708
    %v746 = vunpack.c.l.b16 %v709
    %v747 = vunpack.c.l.b16 %v710
    %v748 = vunpack.c.l.b16 %v711
    %v749 = vpack.c.b16 %v734, %v733
    %v750 = vpack.c.b16 %v736, %v735
    %v751 = vpack.c.b16 %v738, %v737
    %v752 = vpack.c.b16 %v740, %v739
    %v753 = vpack.c.b16 %v742, %v741
    %v754 = vpack.c.b16 %v744, %v743
    %v755 = vpack.c.b16 %v746, %v745
    %v756 = vpack.c.b16 %v748, %v747
    %765 = vmatprep.subr.bf16.mxu0 0
    %766 = vmatpush1.bf16.msra.mxu0 %v749
    %767 = vmatprep.subr.bf16.mxu0 0
    %768 = vmatpush1.bf16.msra.mxu0 %v750
    %769 = vmatprep.subr.bf16.mxu0 0
    %770 = vmatpush1.bf16.msra.mxu0 %v751
    %771 = vmatprep.subr.bf16.mxu0 0
    %772 = vmatpush1.bf16.msra.mxu0 %v752
    %773 = vmatprep.subr.bf16.mxu0 0
    %774 = vmatpush1.bf16.msra.mxu0 %v753
    %775 = vmatprep.subr.bf16.mxu0 0
    %776 = vmatpush1.bf16.msra.mxu0 %v754
    %777 = vmatprep.subr.bf16.mxu0 0
    %778 = vmatpush1.bf16.msra.mxu0 %v755
    %779 = vmatprep.subr.bf16.mxu0 0
    %780 = vmatpush1.bf16.msra.mxu0 %v756
    %781 = vmatprep.subr.bf16.mxu0 0
    %782 = vmatpush1.bf16.msra.mxu0 0
    %783 = vmatprep.subr.bf16.mxu0 0
    %784 = vmatpush1.bf16.msra.mxu0 0
    %785 = vmatprep.subr.bf16.mxu0 0
    %786 = vmatpush1.bf16.msra.mxu0 0
    %787 = vmatprep.subr.bf16.mxu0 0
    %788 = vmatpush1.bf16.msra.mxu0 0
    %789 = vmatprep.subr.bf16.mxu0 0
    %790 = vmatpush1.bf16.msra.mxu0 0
    %791 = vmatprep.subr.bf16.mxu0 0
    %792 = vmatpush1.bf16.msra.mxu0 0
    %793 = vmatprep.subr.bf16.mxu0 0
    %794 = vmatpush1.bf16.msra.mxu0 0
    %795 = vmatprep.subr.bf16.mxu0 0
    %796 = vmatpush1.bf16.msra.mxu0 0
    %797 = vmatprep.mubr.bf16.mxu0 0
    %798 = vmatmul.mubr.bf16.gmra.mrb[0].mxu0 %v694
    %v799 = vpop.f32.mrb[0].mxu0
    %v800 = vadd.f32 %v716, %v799
    %v801 = vpop.f32.mrb[0].mxu0
    %v802 = vpop.f32.mrb[0].mxu0
    %v803 = vpop.f32.mrb[0].mxu0
    %804 = vdwg.mxu0
    %v805 = vpack.c.bf16 %v800, %v800
    %s806 = scalar_lea.vmem [#allocation2], 448
    %v807 = vld [vmem:[%s806] sm:$0xf]
    %v808 = vld [vmem:[%s806 + $0x4] sm:$0xf]
    %v809 = vld [vmem:[%s806 + $0x8] sm:$0xf]
    %v810 = vld [vmem:[%s806 + $0xc] sm:$0xf]
    %v811 = vld [vmem:[%s806 + $0x10] sm:$0xf]
    %v812 = vld [vmem:[%s806 + $0x14] sm:$0xf]
    %v813 = vld [vmem:[%s806 + $0x18] sm:$0xf]
    %v814 = vld [vmem:[%s806 + $0x1c] sm:$0xf]
    %v815 = vld [vmem:[%s806 + $0x20] sm:$0xf]
    %v816 = vld [vmem:[%s806 + $0x24] sm:$0xf]
    %v817 = vld [vmem:[%s806 + $0x28] sm:$0xf]
    %v818 = vld [vmem:[%s806 + $0x2c] sm:$0xf]
    %v819 = vld [vmem:[%s806 + $0x30] sm:$0xf]
    %v820 = vld [vmem:[%s806 + $0x34] sm:$0xf]
    %v821 = vld [vmem:[%s806 + $0x38] sm:$0xf]
    %v822 = vld [vmem:[%s806 + $0x3c] sm:$0xf]
    %v823 = vld [vmem:[%s2 + $0x7] sm:$0x1]
    %v824 = vlaneseq
    %v825 = vshrl.u32 %v824, 7
    %v826 = vsub.s32 0, %v825
    %v827 = vrot.slane %v823, %v826
    %v844 = vunpack.c.l.b16 %v807
    %v845 = vunpack.c.l.b16 %v808
    %v846 = vunpack.c.l.b16 %v809
    %v847 = vunpack.c.l.b16 %v810
    %v848 = vunpack.c.l.b16 %v811
    %v849 = vunpack.c.l.b16 %v812
    %v850 = vunpack.c.l.b16 %v813
    %v851 = vunpack.c.l.b16 %v814
    %v852 = vunpack.c.l.b16 %v815
    %v853 = vunpack.c.l.b16 %v816
    %v854 = vunpack.c.l.b16 %v817
    %v855 = vunpack.c.l.b16 %v818
    %v856 = vunpack.c.l.b16 %v819
    %v857 = vunpack.c.l.b16 %v820
    %v858 = vunpack.c.l.b16 %v821
    %v859 = vunpack.c.l.b16 %v822
    %v860 = vpack.c.b16 %v845, %v844
    %v861 = vpack.c.b16 %v847, %v846
    %v862 = vpack.c.b16 %v849, %v848
    %v863 = vpack.c.b16 %v851, %v850
    %v864 = vpack.c.b16 %v853, %v852
    %v865 = vpack.c.b16 %v855, %v854
    %v866 = vpack.c.b16 %v857, %v856
    %v867 = vpack.c.b16 %v859, %v858
    %876 = vmatprep.subr.bf16.mxu0 0
    %877 = vmatpush1.bf16.msra.mxu0 %v860
    %878 = vmatprep.subr.bf16.mxu0 0
    %879 = vmatpush1.bf16.msra.mxu0 %v861
    %880 = vmatprep.subr.bf16.mxu0 0
    %881 = vmatpush1.bf16.msra.mxu0 %v862
    %882 = vmatprep.subr.bf16.mxu0 0
    %883 = vmatpush1.bf16.msra.mxu0 %v863
    %884 = vmatprep.subr.bf16.mxu0 0
    %885 = vmatpush1.bf16.msra.mxu0 %v864
    %886 = vmatprep.subr.bf16.mxu0 0
    %887 = vmatpush1.bf16.msra.mxu0 %v865
    %888 = vmatprep.subr.bf16.mxu0 0
    %889 = vmatpush1.bf16.msra.mxu0 %v866
    %890 = vmatprep.subr.bf16.mxu0 0
    %891 = vmatpush1.bf16.msra.mxu0 %v867
    %892 = vmatprep.subr.bf16.mxu0 0
    %893 = vmatpush1.bf16.msra.mxu0 0
    %894 = vmatprep.subr.bf16.mxu0 0
    %895 = vmatpush1.bf16.msra.mxu0 0
    %896 = vmatprep.subr.bf16.mxu0 0
    %897 = vmatpush1.bf16.msra.mxu0 0
    %898 = vmatprep.subr.bf16.mxu0 0
    %899 = vmatpush1.bf16.msra.mxu0 0
    %900 = vmatprep.subr.bf16.mxu0 0
    %901 = vmatpush1.bf16.msra.mxu0 0
    %902 = vmatprep.subr.bf16.mxu0 0
    %903 = vmatpush1.bf16.msra.mxu0 0
    %904 = vmatprep.subr.bf16.mxu0 0
    %905 = vmatpush1.bf16.msra.mxu0 0
    %906 = vmatprep.subr.bf16.mxu0 0
    %907 = vmatpush1.bf16.msra.mxu0 0
    %908 = vmatprep.mubr.bf16.mxu0 0
    %909 = vmatmul.mubr.bf16.gmra.mrb[0].mxu0 %v805
    %v910 = vpop.f32.mrb[0].mxu0
    %v911 = vadd.f32 %v827, %v910
    %v912 = vpop.f32.mrb[0].mxu0
    %v913 = vpop.f32.mrb[0].mxu0
    %v914 = vpop.f32.mrb[0].mxu0
    %915 = vdwg.mxu0
    %916 = vst [vmem:[%s3] sm:$0xff] %v911
    // Predicated region
    $region18: #{gesture_detector_forward.1} parent=1 // pred_check
      _
    $region19: #{gesture_detector_forward.1} parent=1 // pred_check_branch
      %918 = sbr.rel (0) target = $region21
    $region20: #{gesture_detector_forward.1} parent=1 // pred_region
      _
    $region21: #{gesture_detector_forward.1} parent=1 // pred_fallthru
      _
    // Predicated region
    $region22: #{gesture_detector_forward.1} parent=1 // pred_check
      _
    $region23: #{gesture_detector_forward.1} parent=1 // pred_check_branch
      %920 = sbr.rel (0) target = $region25
    $region24: #{gesture_detector_forward.1} parent=1 // pred_region
      _
    $region25: #{gesture_detector_forward.1} parent=1 // pred_fallthru
      _
    %921 = vsyncpa [#allocation3], 1

</llo_original>
